<compile_context>
chip_gen: v7x
topology: tpu7x:2x2x1
jax: 0.10.0
libtpu: 0.0.40
codegen_flags: <defaults>
</compile_context>

<pallas_src>
import jax
import jax.numpy as jnp
from jax.experimental import pallas as pl
from jax.experimental.pallas import tpu as pltpu


def _round_up(x, m):
    return (x + m - 1) // m * m


def _default_row_tile(batch):
    # Big tiles amortize the ~0.35us per-grid-step overhead (85%+ of HBM roofline at
    # 512-1024 rows vs ~63% at 256), but keep >= 2 grid steps when possible so both
    # v7x TensorCores get work. Always a multiple of 8 sublanes.
    rt = min(1024, _round_up(batch, 8))
    if batch > 8:
        rt = min(rt, _round_up(-(-batch // 2), 8))
    return rt


def _make_dnn_kernel(num_layers):
    """Kernel refs = (x, W1, b1, ..., WL, bL, out)."""

    def kernel(*refs):
        x_ref = refs[0]
        o_ref = refs[-1]
        params = refs[1:-1]

        h = x_ref[...]                                    # (rows, d_in) f32
        for i in range(num_layers):
            w = params[2 * i][...]                        # bf16 weights (MXU-native)
            b = params[2 * i + 1][...]                    # f32 bias, (1, H) broadcast
            z = jnp.dot(h.astype(w.dtype), w,
                        preferred_element_type=jnp.float32) + b
            h = jnp.tanh(z)
        # sigmoid: exp and approx reciprocal both run on the EUP slot (VALU stays free).
        o_ref[...] = pl.reciprocal(1.0 + jnp.exp(-h), approx=True).astype(o_ref.dtype)

    return kernel


def prepare_dnn_params(weights, biases, weight_dtype=jnp.bfloat16):
    """One-time (outside the per-call path) padding + dtype cast of the parameters.

    - Hidden/output widths are zero-padded to multiples of 128 lanes (exact: padded
      hidden units become tanh(0 + 0) = 0 and multiply zero weight rows downstream;
      padded output columns are sliced off by the wrapper).
    - The first layer's contraction dim is left at the true input width so `x` needs
      no lane padding.
    - Weights are pre-cast to bf16; biases stay f32 (added to the f32 accumulator).
    """
    num_layers = len(weights)
    dims = tuple([int(weights[0].shape[0])] + [int(w.shape[1]) for w in weights])
    params = []
    for li in range(num_layers):
        di, do = dims[li], dims[li + 1]
        dip = di if li == 0 else _round_up(di, 128)
        dop = _round_up(do, 128)
        wp = jnp.zeros((dip, dop), weight_dtype).at[:di, :do].set(
            weights[li].astype(weight_dtype))
        bp = jnp.zeros((1, dop), jnp.float32).at[0, :do].set(
            biases[li].astype(jnp.float32))
        params += [wp, bp]
    return params, dims


def _dnn_forward(x, params, dims, row_tile):
    B, d_in = x.shape
    assert d_in == dims[0], (d_in, dims[0])
    num_layers = len(dims) - 1
    out_dim = dims[-1]
    out_pad = _round_up(out_dim, 128)

    rt = _default_row_tile(B) if row_tile is None else row_tile
    Bp = _round_up(B, rt)
    xp = x if Bp == B else jnp.pad(x, ((0, Bp - B), (0, 0)))

    # x block: full (unpadded) last dim => exactly the useful HBM bytes are read.
    in_specs = [pl.BlockSpec((rt, d_in), lambda i: (i, 0))]
    for li in range(num_layers):
        wp, bp = params[2 * li], params[2 * li + 1]
        # Constant index_map => weights/biases stay resident in VMEM across grid steps.
        # (pipeline_mode=pl.Buffered(1) would drop their second pipeline buffer; skipped
        #  since it saves <0.5 MiB at these layer sizes.)
        in_specs += [
            pl.BlockSpec(wp.shape, lambda i: (0, 0)),
            pl.BlockSpec(bp.shape, lambda i: (0, 0)),
        ]

    out_padded = pl.pallas_call(
        _make_dnn_kernel(num_layers),
        out_shape=jax.ShapeDtypeStruct((Bp, out_pad), x.dtype),
        grid_spec=pltpu.PrefetchScalarGridSpec(
            num_scalar_prefetch=0,
            grid=(Bp // rt,),
            in_specs=in_specs,
            out_specs=pl.BlockSpec((rt, out_pad), lambda i: (i, 0)),
        ),
        compiler_params=pltpu.CompilerParams(
            dimension_semantics=("parallel",),
            # Headroom for 1024-row f32 tiles + resident weights; well under physical
            # VMEM on v5e/v6e/v7x and above v5e's 16 MiB default scoped limit.
            vmem_limit_bytes=32 * 1024 * 1024,
        ),
    )(xp, *params)

    out = out_padded[:B, :out_dim]
    if out.shape[-1] == 1:               # torch .squeeze(-1) semantics
        out = out[..., 0]
    return out


def make_dnn_forward(params, dims, row_tile=None):
    """Returns a jitted forward(x) with padded params baked in (prepared once)."""
    params = list(params)
    dims = tuple(int(d) for d in dims)

    @jax.jit
    def forward(x):
        return _dnn_forward(x, params, dims, row_tile)

    return forward


if __name__ == "__main__":
    # Module defaults: embedding_size=32, num_feature=3, layers_size=[200, 80]
    embedding_size, num_feature = 32, 3
    layers_size = [200, 80]
    in_dim = 1 + 2 * embedding_size * num_feature      # 193

    key = jax.random.PRNGKey(0)
    keys = jax.random.split(key, 2 + 2 * len(layers_size))

    weights, biases = [], []
    d = in_dim
    for li, hsize in enumerate(layers_size):
        w = jax.random.normal(keys[2 + 2 * li], (d, hsize), dtype=jnp.float32) / jnp.sqrt(d)
        b = 0.01 * jax.random.normal(keys[3 + 2 * li], (hsize,), dtype=jnp.float32)
        weights.append(w)
        biases.append(b)
        d = hsize

    # One-time parameter preparation (padding + bf16 cast), outside the per-call path.
    params, dims = prepare_dnn_params(weights, biases)
    forward = make_dnn_forward(params, dims)

    def reference(xr):
        h = xr
        for w, b in zip(weights, biases):
            h = jnp.tanh(h @ w + b)
        h = 1.0 / (1.0 + jnp.exp(-h))
        return h[..., 0] if h.shape[-1] == 1 else h

    # batch=8: single grid step; batch=20: exercises row padding + a 2-step grid.
    for bi, batch in enumerate([8, 20]):
        x = jax.random.normal(keys[bi], (batch, in_dim), dtype=jnp.float32)
        out = jax.block_until_ready(forward(x))
        ref = reference(x)
        assert out.shape == ref.shape, (out.shape, ref.shape)
        # Tolerance accounts for bf16 MXU operands (f32 accumulation) + approx reciprocal.
        err = float(jnp.max(jnp.abs(out - ref)))
        assert jnp.allclose(out, ref, atol=1e-2, rtol=1e-2), err

    print("KERNEL_OK")
</pallas_src>

<mosaic_0001>
module attributes {stable_mosaic.version = 11 : i64} {
  func.func @kernel(%arg0: i32, %arg1: memref<8x193xf32, #tpu.memory_space<vmem>>, %arg2: memref<193x256xbf16, #tpu.memory_space<vmem>>, %arg3: memref<1x256xf32, #tpu.memory_space<vmem>>, %arg4: memref<256x128xbf16, #tpu.memory_space<vmem>>, %arg5: memref<1x128xf32, #tpu.memory_space<vmem>>, %arg6: memref<8x128xf32, #tpu.memory_space<vmem>>) attributes {dimension_semantics = [#tpu.dimension_semantics<parallel>], iteration_bounds = array<i64: 1>, scalar_prefetch = 0 : i64, scratch_operands = 0 : i64, tpu.core_type = #tpu.core_type<tc>, window_params = [{transform_indices = @transform_0, window_bounds = array<i64: 8, 193>}, {pipeline_mode = #tpu.pipeline_mode<synchronous>, transform_indices = @transform_1, window_bounds = array<i64: 193, 256>}, {pipeline_mode = #tpu.pipeline_mode<synchronous>, transform_indices = @transform_2, window_bounds = array<i64: 1, 256>}, {pipeline_mode = #tpu.pipeline_mode<synchronous>, transform_indices = @transform_3, window_bounds = array<i64: 256, 128>}, {pipeline_mode = #tpu.pipeline_mode<synchronous>, transform_indices = @transform_4, window_bounds = array<i64: 1, 128>}, {transform_indices = @transform_5, window_bounds = array<i64: 8, 128>}]} {
    %c0 = arith.constant 0 : index
    %c0_0 = arith.constant 0 : index
    %0 = vector.load %arg1[%c0, %c0_0] : memref<8x193xf32, #tpu.memory_space<vmem>>, vector<8x193xf32>
    %c0_1 = arith.constant 0 : index
    %c0_2 = arith.constant 0 : index
    %1 = vector.load %arg2[%c0_1, %c0_2] : memref<193x256xbf16, #tpu.memory_space<vmem>>, vector<193x256xbf16>
    %c0_3 = arith.constant 0 : index
    %c0_4 = arith.constant 0 : index
    %2 = vector.load %arg3[%c0_3, %c0_4] : memref<1x256xf32, #tpu.memory_space<vmem>>, vector<1x256xf32>
    %3 = arith.truncf %0 : vector<8x193xf32> to vector<8x193xbf16>
    %cst = arith.constant dense<0.000000e+00> : vector<8x256xf32>
    %4 = tpu.matmul %3, %1, %cst {dimension_numbers = #tpu.dot_dimension_numbers<[1], [0], [0], [1], [0, 0, 1, 1], [], []>} : vector<8x193xbf16>, vector<193x256xbf16>, vector<8x256xf32> -> vector<8x256xf32>
    %5 = vector.broadcast %2 : vector<1x256xf32> to vector<8x256xf32>
    %6 = arith.addf %4, %5 : vector<8x256xf32>
    %7 = math.tanh %6 : vector<8x256xf32>
    %c0_5 = arith.constant 0 : index
    %c0_6 = arith.constant 0 : index
    %8 = vector.load %arg4[%c0_5, %c0_6] : memref<256x128xbf16, #tpu.memory_space<vmem>>, vector<256x128xbf16>
    %c0_7 = arith.constant 0 : index
    %c0_8 = arith.constant 0 : index
    %9 = vector.load %arg5[%c0_7, %c0_8] : memref<1x128xf32, #tpu.memory_space<vmem>>, vector<1x128xf32>
    %10 = arith.truncf %7 : vector<8x256xf32> to vector<8x256xbf16>
    %cst_9 = arith.constant dense<0.000000e+00> : vector<8x128xf32>
    %11 = tpu.matmul %10, %8, %cst_9 {dimension_numbers = #tpu.dot_dimension_numbers<[1], [0], [0], [1], [0, 0, 1, 1], [], []>} : vector<8x256xbf16>, vector<256x128xbf16>, vector<8x128xf32> -> vector<8x128xf32>
    %12 = vector.broadcast %9 : vector<1x128xf32> to vector<8x128xf32>
    %13 = arith.addf %11, %12 : vector<8x128xf32>
    %14 = math.tanh %13 : vector<8x128xf32>
    %cst_10 = arith.constant 0.000000e+00 : f32
    %15 = vector.broadcast %cst_10 : f32 to vector<8x128xf32>
    %16 = arith.subf %15, %14 : vector<8x128xf32>
    %17 = math.exp %16 : vector<8x128xf32>
    %cst_11 = arith.constant 1.000000e+00 : f32
    %18 = vector.broadcast %cst_11 : f32 to vector<8x128xf32>
    %19 = arith.addf %18, %17 : vector<8x128xf32>
    %20 = tpu.reciprocal %19 {approx = true} : vector<8x128xf32> -> vector<8x128xf32>
    %c0_12 = arith.constant 0 : index
    %c0_13 = arith.constant 0 : index
    %21 = vector.load %arg6[%c0_12, %c0_13] : memref<8x128xf32, #tpu.memory_space<vmem>>, vector<8x128xf32>
    tpu.vector_store %arg6[%c0_12, %c0_13], %20 {strides = array<i32>} : memref<8x128xf32, #tpu.memory_space<vmem>>, vector<8x128xf32>,
    return
  }
  func.func @transform_0(%arg0: i32) -> (i32, i32) {
    %c0_i32 = arith.constant 0 : i32
    %c0_i32_0 = arith.constant 0 : i32
    return %arg0, %c0_i32 : i32, i32
  }
  func.func @transform_1(%arg0: i32) -> (i32, i32) {
    %c0_i32 = arith.constant 0 : i32
    %c0_i32_0 = arith.constant 0 : i32
    %c0_i32_1 = arith.constant 0 : i32
    return %c0_i32, %c0_i32_0 : i32, i32
  }
  func.func @transform_2(%arg0: i32) -> (i32, i32) {
    %c0_i32 = arith.constant 0 : i32
    %c0_i32_0 = arith.constant 0 : i32
    %c0_i32_1 = arith.constant 0 : i32
    return %c0_i32, %c0_i32_0 : i32, i32
  }
  func.func @transform_3(%arg0: i32) -> (i32, i32) {
    %c0_i32 = arith.constant 0 : i32
    %c0_i32_0 = arith.constant 0 : i32
    %c0_i32_1 = arith.constant 0 : i32
    return %c0_i32, %c0_i32_0 : i32, i32
  }
  func.func @transform_4(%arg0: i32) -> (i32, i32) {
    %c0_i32 = arith.constant 0 : i32
    %c0_i32_0 = arith.constant 0 : i32
    %c0_i32_1 = arith.constant 0 : i32
    return %c0_i32, %c0_i32_0 : i32, i32
  }
  func.func @transform_5(%arg0: i32) -> (i32, i32) {
    %c0_i32 = arith.constant 0 : i32
    %c0_i32_0 = arith.constant 0 : i32
    return %arg0, %c0_i32 : i32, i32
  }
}

</mosaic_0001>

<llo_original>
// kernel: forward.1
$region0: #{forward.1}
  #allocation0 [shape = 'u32[]', space=smem, size = 0x4, offset = 0x4, fixed_abs, tag = 'smem constant byte address 0x4 - core index']
  #allocation1 [shape = 'u32[144,128]{1,0:T(1,128)}', space=vmem, size = 0x12000, scoped, tag = 'internal scratch']
  %s0 = inlined_call_operand.hbm [shape: f32[8,193], index: 0, kind: input, shape index: {}]
  %s1 = inlined_call_operand.hbm [shape: bf16[193,256], index: 1, kind: input, shape index: {}]
  %s2 = inlined_call_operand.vmem [shape: f32[1,256], index: 2, kind: input, shape index: {}]
  %s3 = inlined_call_operand.hbm [shape: bf16[256,128], index: 3, kind: input, shape index: {}]
  %s4 = inlined_call_operand.vmem [shape: f32[1,128], index: 4, kind: input, shape index: {}]
  %s5 = inlined_call_operand.hbm [shape: f32[8,128], index: 5, kind: output, shape index: {}]
  %s6 = sld [smem:[#allocation0]]
  $region42: #{forward.1} parent=0
    _
  %s8 = ssub.s32 1, %s6
  %s9 = scalar_select 0, %s8, %s6
  $region1: #{forward.1} parent=0
    #allocation2 [shape = 'u8[8192]{0}', space=vmem, size = 0x2000, scoped, tag = 'input window, operand 0, single buffered']
    #allocation3 [shape = 's32[1]{0}', space=sflag, size = 0x4, scoped, tag = 'scoped memory for forward.1']
    #allocation4 [shape = 's32[1]{0}', space=sflag, size = 0x4, scoped, tag = 'scoped memory for forward.1']
    #allocation5 [shape = 'u8[102400]{0}', space=vmem, size = 0x19000, scoped, tag = 'input window, operand 1, single buffered']
    #allocation6 [shape = 's32[1]{0}', space=sflag, size = 0x4, scoped, tag = 'scoped memory for forward.1']
    #allocation7 [shape = 'u8[65536]{0}', space=vmem, size = 0x10000, scoped, tag = 'input window, operand 3, single buffered']
    #allocation8 [shape = 'u8[4096]{0}', space=vmem, size = 0x1000, scoped, tag = 'output window, operand 0, single buffered']
    %10 = vsyncpa [#allocation3], 0
    %11 = vsyncpa [#allocation6], 0
    %12 = vsyncpa [#allocation4], 0
    // Predicated region
    $region2: #{forward.1} parent=1 // pred_check
      _
    $region3: #{forward.1} parent=1 // pred_check_branch
      %14 = sbr.rel (0) target = $region5
    $region4: #{forward.1} parent=1 // pred_region
      %s16 = ssub.s32 256, 256
      %17 = vsyncadd [#allocation3], %s16
      %s19 = sshll.u32 [#allocation2], 4
      %s20 = int_to_ptr.vmem [resolvable:$true] %s19
      %22 = dma.hbm_to_vmem [thread:$0]  %s0, 256, %s20, [#allocation3]
    $region5: #{forward.1} parent=1 // pred_fallthru
      _
    // Predicated region
    $region6: #{forward.1} parent=1 // pred_check
      _
    $region7: #{forward.1} parent=1 // pred_check_branch
      %24 = sbr.rel (0) target = $region9
    $region8: #{forward.1} parent=1 // pred_region
      %s26 = ssub.s32 3200, 3200
      %27 = vsyncadd [#allocation6], %s26
      %s28 = sshll.u32 [#allocation5], 4
      %s29 = int_to_ptr.vmem [resolvable:$true] %s28
      %34 = dma.hbm_to_vmem [thread:$0]  %s1, 3200, %s29, [#allocation6], 128, 128, 8
    $region9: #{forward.1} parent=1 // pred_fallthru
      _
    // Predicated region
    $region10: #{forward.1} parent=1 // pred_check
      _
    $region11: #{forward.1} parent=1 // pred_check_branch
      %36 = sbr.rel (0) target = $region13
    $region12: #{forward.1} parent=1 // pred_region
      _
    $region13: #{forward.1} parent=1 // pred_fallthru
      _
    // Predicated region
    $region14: #{forward.1} parent=1 // pred_check
      _
    $region15: #{forward.1} parent=1 // pred_check_branch
      %38 = sbr.rel (0) target = $region17
    $region16: #{forward.1} parent=1 // pred_region
      %s40 = ssub.s32 2048, 2048
      %41 = vsyncadd [#allocation6], %s40
      %s42 = sshll.u32 [#allocation7], 4
      %s43 = int_to_ptr.vmem [resolvable:$true] %s42
      %48 = dma.hbm_to_vmem [thread:$0]  %s3, 2048, %s43, [#allocation6], 64, 64, 4
    $region17: #{forward.1} parent=1 // pred_fallthru
      _
    // Predicated region
    $region18: #{forward.1} parent=1 // pred_check
      _
    $region19: #{forward.1} parent=1 // pred_check_branch
      %50 = sbr.rel (0) target = $region21
    $region20: #{forward.1} parent=1 // pred_region
      _
    $region21: #{forward.1} parent=1 // pred_fallthru
      _
    // Predicated region
    $region22: #{forward.1} parent=1 // pred_check
      _
    $region23: #{forward.1} parent=1 // pred_check_branch
      %52 = sbr.rel (0) target = $region25
    $region24: #{forward.1} parent=1 // pred_region
      %53 = dma.done [#allocation3], 256
    $region25: #{forward.1} parent=1 // pred_fallthru
      _
    // Predicated region
    $region26: #{forward.1} parent=1 // pred_check
      _
    $region27: #{forward.1} parent=1 // pred_check_branch
      %55 = sbr.rel (0) target = $region29
    $region28: #{forward.1} parent=1 // pred_region
      %56 = dma.done [#allocation6], 3200
    $region29: #{forward.1} parent=1 // pred_fallthru
      _
    // Predicated region
    $region30: #{forward.1} parent=1 // pred_check
      _
    $region31: #{forward.1} parent=1 // pred_check_branch
      %58 = sbr.rel (0) target = $region33
    $region32: #{forward.1} parent=1 // pred_region
      %59 = dma.done [#allocation6], 2048
    $region33: #{forward.1} parent=1 // pred_fallthru
      _
    %v61 = vld [vmem:[#allocation2] sm:$0xff]
    %v62 = vld [vmem:[#allocation2 + $0x8] sm:$0xff]
    %v63 = vld [vmem:[#allocation5] sm:$0xff]
    %v64 = vld [vmem:[#allocation5 + $0x8] sm:$0xff]
    %v65 = vld [vmem:[#allocation5 + $0x10] sm:$0xff]
    %v66 = vld [vmem:[#allocation5 + $0x18] sm:$0xff]
    %v67 = vld [vmem:[#allocation5 + $0x20] sm:$0xff]
    %v68 = vld [vmem:[#allocation5 + $0x28] sm:$0xff]
    %v69 = vld [vmem:[#allocation5 + $0x30] sm:$0xff]
    %v70 = vld [vmem:[#allocation5 + $0x38] sm:$0xff]
    %v71 = vld [vmem:[#allocation5 + $0x40] sm:$0xff]
    %v72 = vld [vmem:[#allocation5 + $0x48] sm:$0xff]
    %v73 = vld [vmem:[#allocation5 + $0x50] sm:$0xff]
    %v74 = vld [vmem:[#allocation5 + $0x58] sm:$0xff]
    %v75 = vld [vmem:[#allocation5 + $0x60] sm:$0xff]
    %v76 = vld [vmem:[#allocation5 + $0x68] sm:$0xff]
    %v77 = vld [vmem:[#allocation5 + $0x70] sm:$0xff]
    %v78 = vld [vmem:[#allocation5 + $0x78] sm:$0xff]
    %v79 = vld [vmem:[#allocation5 + $0x80] sm:$0xff]
    %v80 = vld [vmem:[#allocation5 + $0x88] sm:$0xff]
    %v81 = vld [vmem:[#allocation5 + $0x90] sm:$0xff]
    %v82 = vld [vmem:[#allocation5 + $0x98] sm:$0xff]
    %v83 = vld [vmem:[#allocation5 + $0xa0] sm:$0xff]
    %v84 = vld [vmem:[#allocation5 + $0xa8] sm:$0xff]
    %v85 = vld [vmem:[#allocation5 + $0xb0] sm:$0xff]
    %v86 = vld [vmem:[#allocation5 + $0xb8] sm:$0xff]
    %v87 = vld [vmem:[#allocation5 + $0xc0] sm:$0x11]
    %v88 = vld [vmem:[%s2] sm:$0x3]
    %v89 = vpack.c.bf16 %v61, %v61
    %v90 = vpack.c.bf16 %v62, %v62
    %v92 = vlaneseq
    %v93 = vshrl.u32 %v92, 7
    %v94 = vsub.s32 0, %v93
    %v95 = vrot.slane %v88, %v94
    %v96 = vlaneseq
    %v97 = vshrl.u32 %v96, 7
    %v98 = vsub.s32 1, %v97
    %v99 = vrot.slane %v88, %v98
    %v127 = vunpack.c.l.b16 %v63
    %v128 = vunpack.c.h.b16 %v63
    %v129 = vunpack.c.l.b16 %v64
    %v130 = vunpack.c.h.b16 %v64
    %v131 = vunpack.c.l.b16 %v65
    %v132 = vunpack.c.h.b16 %v65
    %v133 = vunpack.c.l.b16 %v66
    %v134 = vunpack.c.h.b16 %v66
    %v135 = vunpack.c.l.b16 %v67
    %v136 = vunpack.c.h.b16 %v67
    %v137 = vunpack.c.l.b16 %v68
    %v138 = vunpack.c.h.b16 %v68
    %v139 = vunpack.c.l.b16 %v69
    %v140 = vunpack.c.h.b16 %v69
    %v141 = vunpack.c.l.b16 %v70
    %v142 = vunpack.c.h.b16 %v70
    %v143 = vunpack.c.l.b16 %v71
    %v144 = vunpack.c.h.b16 %v71
    %v145 = vunpack.c.l.b16 %v72
    %v146 = vunpack.c.h.b16 %v72
    %v147 = vunpack.c.l.b16 %v73
    %v148 = vunpack.c.h.b16 %v73
    %v149 = vunpack.c.l.b16 %v74
    %v150 = vunpack.c.h.b16 %v74
    %v151 = vunpack.c.l.b16 %v75
    %v152 = vunpack.c.h.b16 %v75
    %v153 = vunpack.c.l.b16 %v76
    %v154 = vunpack.c.h.b16 %v76
    %v155 = vunpack.c.l.b16 %v77
    %v156 = vunpack.c.h.b16 %v77
    %v157 = vunpack.c.l.b16 %v78
    %v158 = vunpack.c.h.b16 %v78
    %v159 = vunpack.c.l.b16 %v79
    %v160 = vunpack.c.h.b16 %v79
    %v161 = vunpack.c.l.b16 %v80
    %v162 = vunpack.c.h.b16 %v80
    %v163 = vunpack.c.l.b16 %v81
    %v164 = vunpack.c.h.b16 %v81
    %v165 = vunpack.c.l.b16 %v82
    %v166 = vunpack.c.h.b16 %v82
    %v167 = vunpack.c.l.b16 %v83
    %v168 = vunpack.c.h.b16 %v83
    %v169 = vunpack.c.l.b16 %v84
    %v170 = vunpack.c.h.b16 %v84
    %v171 = vunpack.c.l.b16 %v85
    %v172 = vunpack.c.h.b16 %v85
    %v173 = vunpack.c.l.b16 %v86
    %v174 = vunpack.c.h.b16 %v86
    %v175 = vunpack.c.l.b16 %v87
    %v176 = vunpack.c.h.b16 %v87
    %v177 = vpack.c.b16 %v129, %v127
    %v178 = vpack.c.b16 %v130, %v128
    %v179 = vpack.c.b16 %v133, %v131
    %v180 = vpack.c.b16 %v134, %v132
    %v181 = vpack.c.b16 %v137, %v135
    %v182 = vpack.c.b16 %v138, %v136
    %v183 = vpack.c.b16 %v141, %v139
    %v184 = vpack.c.b16 %v142, %v140
    %v185 = vpack.c.b16 %v145, %v143
    %v186 = vpack.c.b16 %v146, %v144
    %v187 = vpack.c.b16 %v149, %v147
    %v188 = vpack.c.b16 %v150, %v148
    %v189 = vpack.c.b16 %v153, %v151
    %v190 = vpack.c.b16 %v154, %v152
    %v191 = vpack.c.b16 %v157, %v155
    %v192 = vpack.c.b16 %v158, %v156
    %v193 = vpack.c.b16 %v161, %v159
    %v194 = vpack.c.b16 %v162, %v160
    %v195 = vpack.c.b16 %v165, %v163
    %v196 = vpack.c.b16 %v166, %v164
    %v197 = vpack.c.b16 %v169, %v167
    %v198 = vpack.c.b16 %v170, %v168
    %v199 = vpack.c.b16 %v173, %v171
    %v200 = vpack.c.b16 %v174, %v172
    %v201 = vpack.c.b16 %v175, %v175
    %v202 = vpack.c.b16 %v176, %v176
    %vm227 = vcmask 531456
    %v229 = vsel %vm227, %v90, 0
    %vm231 = vcmask 1040384
    %v232 = vsel 0, 4294967295, 65535
    %v233 = vsel %vm231, %v232, 0
    %v235 = vand.u32 %v201, %v233
    %v238 = vand.u32 %v202, %v233
    %240 = vmatprep.subr.bf16.mxu0 %v178
    %241 = vmatpush1.bf16.msra.mxu0 %v177
    %242 = vmatprep.subr.bf16.mxu0 %v180
    %243 = vmatpush1.bf16.msra.mxu0 %v179
    %244 = vmatprep.subr.bf16.mxu0 %v182
    %245 = vmatpush1.bf16.msra.mxu0 %v181
    %246 = vmatprep.subr.bf16.mxu0 %v184
    %247 = vmatpush1.bf16.msra.mxu0 %v183
    %248 = vmatprep.subr.bf16.mxu0 %v186
    %249 = vmatpush1.bf16.msra.mxu0 %v185
    %250 = vmatprep.subr.bf16.mxu0 %v188
    %251 = vmatpush1.bf16.msra.mxu0 %v187
    %252 = vmatprep.subr.bf16.mxu0 %v190
    %253 = vmatpush1.bf16.msra.mxu0 %v189
    %254 = vmatprep.subr.bf16.mxu0 %v192
    %255 = vmatpush1.bf16.msra.mxu0 %v191
    %256 = vmatprep.subr.bf16.mxu0 %v194
    %257 = vmatpush1.bf16.msra.mxu0 %v193
    %258 = vmatprep.subr.bf16.mxu0 %v196
    %259 = vmatpush1.bf16.msra.mxu0 %v195
    %260 = vmatprep.subr.bf16.mxu0 %v198
    %261 = vmatpush1.bf16.msra.mxu0 %v197
    %262 = vmatprep.subr.bf16.mxu0 %v200
    %263 = vmatpush1.bf16.msra.mxu0 %v199
    %264 = vmatprep.subr.bf16.mxu0 %v238
    %265 = vmatpush1.bf16.msra.mxu0 %v235
    %266 = vmatprep.subr.bf16.mxu0 0
    %267 = vmatpush1.bf16.msra.mxu0 0
    %268 = vmatprep.subr.bf16.mxu0 0
    %269 = vmatpush1.bf16.msra.mxu0 0
    %270 = vmatprep.subr.bf16.mxu0 0
    %271 = vmatpush1.bf16.msra.mxu0 0
    %272 = vmatprep.mubr.bf16.mxu0 %v229
    %273 = vmatmul.mubr.bf16.gmra.mrb[0].mxu0 %v89
    %v274 = vpop.f32.mrb[0].mxu0
    %v275 = vadd.f32 %v95, %v274
    %v276 = vpop.f32.mrb[0].mxu0
    %v277 = vadd.f32 %v99, %v276
    %v278 = vpop.f32.mrb[0].mxu0
    %v279 = vpop.f32.mrb[0].mxu0
    %280 = vdwg.mxu0
    %v281 = vtanh.pop %v275
    %v282 = vtanh.pop %v277
    %v283 = vld [vmem:[#allocation7] sm:$0xf]
    %v284 = vld [vmem:[#allocation7 + $0x4] sm:$0xf]
    %v285 = vld [vmem:[#allocation7 + $0x8] sm:$0xf]
    %v286 = vld [vmem:[#allocation7 + $0xc] sm:$0xf]
    %v287 = vld [vmem:[#allocation7 + $0x10] sm:$0xf]
    %v288 = vld [vmem:[#allocation7 + $0x14] sm:$0xf]
    %v289 = vld [vmem:[#allocation7 + $0x18] sm:$0xf]
    %v290 = vld [vmem:[#allocation7 + $0x1c] sm:$0xf]
    %v291 = vld [vmem:[#allocation7 + $0x20] sm:$0xf]
    %v292 = vld [vmem:[#allocation7 + $0x24] sm:$0xf]
    %v293 = vld [vmem:[#allocation7 + $0x28] sm:$0xf]
    %v294 = vld [vmem:[#allocation7 + $0x2c] sm:$0xf]
    %v295 = vld [vmem:[#allocation7 + $0x30] sm:$0xf]
    %v296 = vld [vmem:[#allocation7 + $0x34] sm:$0xf]
    %v297 = vld [vmem:[#allocation7 + $0x38] sm:$0xf]
    %v298 = vld [vmem:[#allocation7 + $0x3c] sm:$0xf]
    %v299 = vld [vmem:[#allocation7 + $0x40] sm:$0xf]
    %v300 = vld [vmem:[#allocation7 + $0x44] sm:$0xf]
    %v301 = vld [vmem:[#allocation7 + $0x48] sm:$0xf]
    %v302 = vld [vmem:[#allocation7 + $0x4c] sm:$0xf]
    %v303 = vld [vmem:[#allocation7 + $0x50] sm:$0xf]
    %v304 = vld [vmem:[#allocation7 + $0x54] sm:$0xf]
    %v305 = vld [vmem:[#allocation7 + $0x58] sm:$0xf]
    %v306 = vld [vmem:[#allocation7 + $0x5c] sm:$0xf]
    %v307 = vld [vmem:[#allocation7 + $0x60] sm:$0xf]
    %v308 = vld [vmem:[#allocation7 + $0x64] sm:$0xf]
    %v309 = vld [vmem:[#allocation7 + $0x68] sm:$0xf]
    %v310 = vld [vmem:[#allocation7 + $0x6c] sm:$0xf]
    %v311 = vld [vmem:[#allocation7 + $0x70] sm:$0xf]
    %v312 = vld [vmem:[#allocation7 + $0x74] sm:$0xf]
    %v313 = vld [vmem:[#allocation7 + $0x78] sm:$0xf]
    %v314 = vld [vmem:[#allocation7 + $0x7c] sm:$0xf]
    %v315 = vld [vmem:[%s4] sm:$0x1]
    %v316 = vpack.c.bf16 %v281, %v281
    %v317 = vpack.c.bf16 %v282, %v282
    %v319 = vlaneseq
    %v320 = vshrl.u32 %v319, 7
    %v321 = vsub.s32 0, %v320
    %v322 = vrot.slane %v315, %v321
    %v356 = vunpack.c.l.b16 %v283
    %v357 = vunpack.c.l.b16 %v284
    %v358 = vunpack.c.l.b16 %v285
    %v359 = vunpack.c.l.b16 %v286
    %v360 = vunpack.c.l.b16 %v287
    %v361 = vunpack.c.l.b16 %v288
    %v362 = vunpack.c.l.b16 %v289
    %v363 = vunpack.c.l.b16 %v290
    %v364 = vunpack.c.l.b16 %v291
    %v365 = vunpack.c.l.b16 %v292
    %v366 = vunpack.c.l.b16 %v293
    %v367 = vunpack.c.l.b16 %v294
    %v368 = vunpack.c.l.b16 %v295
    %v369 = vunpack.c.l.b16 %v296
    %v370 = vunpack.c.l.b16 %v297
    %v371 = vunpack.c.l.b16 %v298
    %v372 = vunpack.c.l.b16 %v299
    %v373 = vunpack.c.l.b16 %v300
    %v374 = vunpack.c.l.b16 %v301
    %v375 = vunpack.c.l.b16 %v302
    %v376 = vunpack.c.l.b16 %v303
    %v377 = vunpack.c.l.b16 %v304
    %v378 = vunpack.c.l.b16 %v305
    %v379 = vunpack.c.l.b16 %v306
    %v380 = vunpack.c.l.b16 %v307
    %v381 = vunpack.c.l.b16 %v308
    %v382 = vunpack.c.l.b16 %v309
    %v383 = vunpack.c.l.b16 %v310
    %v384 = vunpack.c.l.b16 %v311
    %v385 = vunpack.c.l.b16 %v312
    %v386 = vunpack.c.l.b16 %v313
    %v387 = vunpack.c.l.b16 %v314
    %v388 = vpack.c.b16 %v357, %v356
    %v389 = vpack.c.b16 %v359, %v358
    %v390 = vpack.c.b16 %v361, %v360
    %v391 = vpack.c.b16 %v363, %v362
    %v392 = vpack.c.b16 %v365, %v364
    %v393 = vpack.c.b16 %v367, %v366
    %v394 = vpack.c.b16 %v369, %v368
    %v395 = vpack.c.b16 %v371, %v370
    %v396 = vpack.c.b16 %v373, %v372
    %v397 = vpack.c.b16 %v375, %v374
    %v398 = vpack.c.b16 %v377, %v376
    %v399 = vpack.c.b16 %v379, %v378
    %v400 = vpack.c.b16 %v381, %v380
    %v401 = vpack.c.b16 %v383, %v382
    %v402 = vpack.c.b16 %v385, %v384
    %v403 = vpack.c.b16 %v387, %v386
    %420 = vmatprep.subr.bf16.mxu0 0
    %421 = vmatpush1.bf16.msra.mxu0 %v388
    %422 = vmatprep.subr.bf16.mxu0 0
    %423 = vmatpush1.bf16.msra.mxu0 %v389
    %424 = vmatprep.subr.bf16.mxu0 0
    %425 = vmatpush1.bf16.msra.mxu0 %v390
    %426 = vmatprep.subr.bf16.mxu0 0
    %427 = vmatpush1.bf16.msra.mxu0 %v391
    %428 = vmatprep.subr.bf16.mxu0 0
    %429 = vmatpush1.bf16.msra.mxu0 %v392
    %430 = vmatprep.subr.bf16.mxu0 0
    %431 = vmatpush1.bf16.msra.mxu0 %v393
    %432 = vmatprep.subr.bf16.mxu0 0
    %433 = vmatpush1.bf16.msra.mxu0 %v394
    %434 = vmatprep.subr.bf16.mxu0 0
    %435 = vmatpush1.bf16.msra.mxu0 %v395
    %436 = vmatprep.subr.bf16.mxu0 0
    %437 = vmatpush1.bf16.msra.mxu0 %v396
    %438 = vmatprep.subr.bf16.mxu0 0
    %439 = vmatpush1.bf16.msra.mxu0 %v397
    %440 = vmatprep.subr.bf16.mxu0 0
    %441 = vmatpush1.bf16.msra.mxu0 %v398
    %442 = vmatprep.subr.bf16.mxu0 0
    %443 = vmatpush1.bf16.msra.mxu0 %v399
    %444 = vmatprep.subr.bf16.mxu0 0
    %445 = vmatpush1.bf16.msra.mxu0 %v400
    %446 = vmatprep.subr.bf16.mxu0 0
    %447 = vmatpush1.bf16.msra.mxu0 %v401
    %448 = vmatprep.subr.bf16.mxu0 0
    %449 = vmatpush1.bf16.msra.mxu0 %v402
    %450 = vmatprep.subr.bf16.mxu0 0
    %451 = vmatpush1.bf16.msra.mxu0 %v403
    %452 = vmatprep.mubr.bf16.mxu0 %v317
    %453 = vmatmul.mubr.bf16.gmra.mrb[0].mxu0 %v316
    %v454 = vpop.f32.mrb[0].mxu0
    %v455 = vadd.f32 %v322, %v454
    %v456 = vpop.f32.mrb[0].mxu0
    %v457 = vpop.f32.mrb[0].mxu0
    %v458 = vpop.f32.mrb[0].mxu0
    %459 = vdwg.mxu0
    %v460 = vtanh.pop %v455
    %v461 = vsub.f32 0.0, %v460
    %v462 = vmul.f32 %v461, 1.442695
    %v463 = vpow.pop %v462
    %v464 = vadd.f32 %v463, 1.0
    %v465 = vrcp.pop %v464
    %466 = vst [vmem:[#allocation8] sm:$0xff] %v465
    // Predicated region
    $region34: #{forward.1} parent=1 // pred_check
      _
    $region35: #{forward.1} parent=1 // pred_check_branch
      %468 = sbr.rel (0) target = $region37
    $region36: #{forward.1} parent=1 // pred_region
      %s470 = ssub.s32 128, 128
      %471 = vsyncadd [#allocation4], %s470
      %s473 = sshll.u32 [#allocation8], 4
      %s474 = int_to_ptr.vmem [resolvable:$true] %s473
      %476 = dma.vmem_to_hbm [thread:$0]  %s474, 128, %s5, [#allocation4]
    $region37: #{forward.1} parent=1 // pred_fallthru
      _
    // Predicated region
    $region38: #{forward.1} parent=1 // pred_check
      _
    $region39: #{forward.1} parent=1 // pred_check_branch
      %478 = sbr.rel (0) target = $region41
    $region40: #{forward.1} parent=1 // pred_region
      %479 = dma.done [#allocation4], 128
    $region41: #{forward.1} parent=1 // pred_fallthru
      _
    %480 = vsyncpa [#allocation3], 1
    %481 = vsyncpa [#allocation6], 1
    %482 = vsyncpa [#allocation4], 1

</llo_original>
